<compile_context>
chip_gen: v6e
topology: v6e:2x2x1
jax: 0.10.0
libtpu: 0.0.40
codegen_flags: <defaults>
</compile_context>

<pallas_src>
import functools

import jax
import jax.numpy as jnp
from jax.experimental import pallas as pl
from jax.experimental.pallas import tpu as pltpu

HIDDEN = 1000            # fc output features, fixed by the module definition
HIDDEN_PAD = 1024        # padded to a lane multiple
BN_EPS = 1e-5
LANE = 128
SUBLANE = 8
TARGET_TILE_BYTES = 4 * 1024 * 1024   # per-buffer tile target (streaming path)


def _cdiv(a, b):
    return -(-a // b)


def _round_up(v, m):
    return ((v + m - 1) // m) * m


def _vmem_capacity_bytes():
    try:
        return int(pltpu.get_tpu_info().vmem_capacity_bytes)
    except Exception:
        return 64 * 1024 * 1024   # conservative default (v7x-sized)


# ---------------------------------------------------------------------------
# Kernels
# ---------------------------------------------------------------------------
def _fused_kernel(x_ref, wfc_ref, bfc_ref, wconv_ref, bconv_ref,
                  scale_ref, shift_ref, o_ref, *, inv_hw, native_mul):
    """Per-sample: pool -> fc -> 1x1 conv -> BN -> ReLU -> broadcast multiply."""
    # Spatial mean per channel: (C, HW) -> (C, 1)
    pooled = jnp.sum(x_ref[0].astype(jnp.float32), axis=-1, keepdims=True) * inv_hw
    # fc: h[j] = sum_c pooled[c] * W_fc[j, c] + b_fc[j]        -> (1, 1024)
    h = jnp.sum(wfc_ref[...] * pooled, axis=0, keepdims=True) + bfc_ref[...]
    # 1x1 conv: z[c] = sum_j h[j] * W_conv[c, j] + b_conv[c]   -> (C, 1)
    z = jnp.sum(wconv_ref[...] * h, axis=-1, keepdims=True) + bconv_ref[...]
    # folded BatchNorm (inference) + ReLU
    s = jnp.maximum(z * scale_ref[...] + shift_ref[...], 0.0)
    if native_mul:
        o_ref[0] = x_ref[0] * s.astype(o_ref.dtype)
    else:
        o_ref[0] = (x_ref[0].astype(jnp.float32) * s).astype(o_ref.dtype)


def _pool_sum_kernel(x_ref, sum_ref, *, hw, st, need_mask):
    # Accumulate per-row spatial sums across the (last, "arbitrary") grid axis.
    @pl.when(pl.program_id(1) == 0)
    def _():
        sum_ref[...] = jnp.zeros_like(sum_ref)

    xf = x_ref[...].astype(jnp.float32)
    if need_mask:   # ragged last spatial tile: zero the out-of-bounds lanes
        col = pl.program_id(1) * st + jax.lax.broadcasted_iota(jnp.int32, xf.shape, 1)
        xf = jnp.where(col < hw, xf, 0.0)
    sum_ref[...] += jnp.sum(xf, axis=-1, keepdims=True)


def _scale_kernel(x_ref, s_ref, o_ref, *, native_mul):
    # Pure bandwidth-bound broadcast multiply (OOB writes of edge tiles dropped).
    if native_mul:
        o_ref[...] = x_ref[...] * s_ref[...].astype(o_ref.dtype)
    else:
        o_ref[...] = (x_ref[...].astype(jnp.float32) * s_ref[...]).astype(o_ref.dtype)


# ---------------------------------------------------------------------------
# Parameter preparation (hoisted out of the forward path; cache the result)
# ---------------------------------------------------------------------------
def prepare_params(params):
    c_out = params["b_conv"].shape[0]
    pad_h = HIDDEN_PAD - HIDDEN
    wfc_t = jnp.pad(params["w_fc"].astype(jnp.float32).T, ((0, 0), (0, pad_h)))
    bfc = jnp.pad(params["b_fc"].astype(jnp.float32), (0, pad_h)).reshape(1, HIDDEN_PAD)
    wconv = jnp.pad(params["w_conv"].reshape(c_out, HIDDEN).astype(jnp.float32),
                    ((0, 0), (0, pad_h)))
    bconv = params["b_conv"].astype(jnp.float32).reshape(c_out, 1)
    scale = (params["gamma"] / jnp.sqrt(params["var"] + BN_EPS)
             ).astype(jnp.float32).reshape(c_out, 1)
    shift = (params["beta"].astype(jnp.float32).reshape(c_out, 1)
             - params["mean"].astype(jnp.float32).reshape(c_out, 1) * scale)
    return {"wfc_t": wfc_t, "bfc": bfc, "wconv": wconv, "bconv": bconv,
            "scale": scale, "shift": shift}


# ---------------------------------------------------------------------------
# Forward
# ---------------------------------------------------------------------------
def fca_forward(x_nchw, prepared, *, force_fallback=False, alias_input=False):
    N, C, H, W = x_nchw.shape
    HW = H * W
    NC = N * C
    dtype = x_nchw.dtype
    itemsize = jnp.dtype(dtype).itemsize

    cout = prepared["bconv"].shape[0]
    assert cout == C, "expand_as(x) * x requires out_channels == in_channels"
    assert prepared["wfc_t"].shape[0] == C, "fc in_features must equal C"

    native_mul = jnp.dtype(dtype) != jnp.dtype(jnp.float32)
    inv_hw = 1.0 / float(HW)
    aliases = {0: 0} if alias_input else {}

    cap = _vmem_capacity_bytes()
    budget = (3 * cap) // 4   # ~48 MiB on v7x, ~96 MiB on v5e/v6e

    # in+out double-buffered + one f32 slab temp (headroom) + resident weights
    fused_bytes = ((4 * itemsize + 4) * C * HW
                   + 2 * C * HIDDEN_PAD * 4 + 8 * HIDDEN_PAD + 16 * C + (1 << 20))

    # ---------------- primary path: fused per-sample kernel ------------------
    if not force_fallback and fused_bytes <= budget:
        x3 = x_nchw.reshape(N, C, HW)                       # free reshape
        kernel = functools.partial(_fused_kernel, inv_hw=inv_hw,
                                   native_mul=native_mul)
        wmap = lambda n: (0, 0)                             # weights stay resident
        out3 = pl.pallas_call(
            kernel,
            out_shape=jax.ShapeDtypeStruct((N, C, HW), dtype),
            grid_spec=pltpu.PrefetchScalarGridSpec(
                num_scalar_prefetch=0,
                grid=(N,),
                in_specs=[
                    pl.BlockSpec((1, C, HW), lambda n: (n, 0, 0)),   # x slab
                    pl.BlockSpec((C, HIDDEN_PAD), wmap),             # W_fc^T
                    pl.BlockSpec((1, HIDDEN_PAD), wmap),             # b_fc
                    pl.BlockSpec((cout, HIDDEN_PAD), wmap),          # W_conv
                    pl.BlockSpec((cout, 1), wmap),                   # b_conv
                    pl.BlockSpec((cout, 1), wmap),                   # BN scale
                    pl.BlockSpec((cout, 1), wmap),                   # BN shift
                ],
                out_specs=pl.BlockSpec((1, C, HW), lambda n: (n, 0, 0)),
            ),
            compiler_params=pltpu.CompilerParams(
                dimension_semantics=("parallel",),
                vmem_limit_bytes=budget),
            input_output_aliases=aliases,
        )(x3, prepared["wfc_t"], prepared["bfc"], prepared["wconv"],
          prepared["bconv"], prepared["scale"], prepared["shift"])
        return out3.reshape(N, C, H, W)

    # ---------------- fallback: streaming 2-pass path -------------------------
    # Lane (spatial) tile: full HW when it fits (legal for any HW), else a
    # 128-multiple tile with in-kernel masking of the ragged edge.
    max_sp = 4096 if cap > (96 << 20) else 2048
    if HW <= max_sp:
        st = HW
        need_mask = False
    else:
        st = max_sp
        need_mask = (HW % st) != 0

    # Row (N*C) tile: target ~TARGET_TILE_BYTES per buffer, sublane-aligned,
    # and >=2 row blocks when possible so both v7x TensorCores get work.
    if NC <= SUBLANE:
        rt = NC
    else:
        rt = max(SUBLANE,
                 (TARGET_TILE_BYTES // max(1, st * itemsize)) // SUBLANE * SUBLANE)
        if NC >= 2 * SUBLANE:
            rt = min(rt, _round_up(_cdiv(NC, 2), SUBLANE))
        rt = min(rt, max(SUBLANE, (NC // SUBLANE) * SUBLANE))

    row_blocks = _cdiv(NC, rt)
    sp_blocks = _cdiv(HW, st)
    vmem_limit = min(budget, 64 * 1024 * 1024)

    x2 = x_nchw.reshape(NC, HW)                              # free reshape

    # pass 1: per-row spatial sums
    pool_kernel = functools.partial(_pool_sum_kernel, hw=HW, st=st,
                                    need_mask=need_mask)
    sums = pl.pallas_call(
        pool_kernel,
        out_shape=jax.ShapeDtypeStruct((NC, 1), jnp.float32),
        grid_spec=pltpu.PrefetchScalarGridSpec(
            num_scalar_prefetch=0,
            grid=(row_blocks, sp_blocks),
            in_specs=[pl.BlockSpec((rt, st), lambda i, j: (i, j))],
            out_specs=pl.BlockSpec((rt, 1), lambda i, j: (i, 0)),
        ),
        compiler_params=pltpu.CompilerParams(
            dimension_semantics=("parallel", "arbitrary"),
            vmem_limit_bytes=vmem_limit),
    )(x2)

    # squeeze path in plain jnp: M = N rows can never fill the MXU, and this
    # avoids an extra Pallas launch + HBM round trips.
    pooled = sums.reshape(N, C) * inv_hw
    h = pooled @ prepared["wfc_t"] + prepared["bfc"]                   # (N, 1024)
    z = h @ prepared["wconv"].T + prepared["bconv"].T                  # (N, C)
    s = jnp.maximum(z * prepared["scale"].T + prepared["shift"].T, 0.0)
    s_rows = s.reshape(NC, 1)

    # pass 2: streaming broadcast multiply
    scale_kernel = functools.partial(_scale_kernel, native_mul=native_mul)
    out2 = pl.pallas_call(
        scale_kernel,
        out_shape=jax.ShapeDtypeStruct((NC, HW), dtype),
        grid_spec=pltpu.PrefetchScalarGridSpec(
            num_scalar_prefetch=0,
            grid=(row_blocks, sp_blocks),
            in_specs=[
                pl.BlockSpec((rt, st), lambda i, j: (i, j)),   # x tile
                pl.BlockSpec((rt, 1), lambda i, j: (i, 0)),    # per-row scale
            ],
            out_specs=pl.BlockSpec((rt, st), lambda i, j: (i, j)),
        ),
        compiler_params=pltpu.CompilerParams(
            dimension_semantics=("parallel", "parallel"),
            vmem_limit_bytes=vmem_limit),
        input_output_aliases=aliases,
    )(x2, s_rows)

    return out2.reshape(N, C, H, W)


# ---------------------------------------------------------------------------
# Pure-JAX reference (mirrors the PyTorch forward, BN in eval mode)
# ---------------------------------------------------------------------------
def fca_reference(x, params):
    pooled = x.mean(axis=(2, 3))                                        # (N, C)
    h = pooled @ params["w_fc"].T + params["b_fc"]                      # (N, 1000)
    z = h @ params["w_conv"].reshape(-1, HIDDEN).T + params["b_conv"]   # (N, C)
    s = (z - params["mean"]) / jnp.sqrt(params["var"] + BN_EPS) \
        * params["gamma"] + params["beta"]
    s = jnp.maximum(s, 0.0)
    return x * s[:, :, None, None]


def make_params(key, in_channels, out_channels):
    ks = jax.random.split(key, 8)
    return {
        "w_fc": jax.random.normal(ks[0], (HIDDEN, in_channels), jnp.float32) * 0.05,
        "b_fc": jax.random.normal(ks[1], (HIDDEN,), jnp.float32) * 0.05,
        "w_conv": jax.random.normal(ks[2], (out_channels, HIDDEN, 1, 1),
                                    jnp.float32) * 0.05,
        "b_conv": jax.random.normal(ks[3], (out_channels,), jnp.float32) * 0.05,
        "gamma": 1.0 + 0.1 * jax.random.normal(ks[4], (out_channels,), jnp.float32),
        "beta": 0.1 * jax.random.normal(ks[5], (out_channels,), jnp.float32),
        "mean": 0.1 * jax.random.normal(ks[6], (out_channels,), jnp.float32),
        "var": 0.5 + jnp.abs(jax.random.normal(ks[7], (out_channels,), jnp.float32)),
    }


if __name__ == "__main__":
    # expand_as in the PyTorch forward requires out_channels == in_channels
    N, C, H, W = 2, 4, 16, 16
    key = jax.random.PRNGKey(0)
    kx, kp, kx2 = jax.random.split(key, 3)
    x = jax.random.normal(kx, (N, C, H, W), jnp.float32)
    params = make_params(kp, C, C)
    prepared = prepare_params(params)   # hoisted / cached parameter glue

    fca = jax.jit(fca_forward, static_argnames=("force_fallback", "alias_input"))

    # Primary (fused single-pass) path.
    out = jax.block_until_ready(fca(x, prepared))
    ref = fca_reference(x, params)
    assert out.shape == x.shape
    assert jnp.allclose(out, ref, atol=1e-4, rtol=1e-4), "fused path mismatch"

    # Streaming fallback path (unaligned spatial extent exercises cdiv grids
    # and the ragged-edge lane masking in the pooling kernel).
    H2, W2 = 65, 65
    x_big = jax.random.normal(kx2, (N, C, H2, W2), jnp.float32)
    out2 = jax.block_until_ready(fca(x_big, prepared, force_fallback=True))
    ref2 = fca_reference(x_big, params)
    assert out2.shape == x_big.shape
    assert jnp.allclose(out2, ref2, atol=1e-4, rtol=1e-4), "fallback path mismatch"

    # TODO(synk): BatchNorm2d is implemented in inference mode (running stats);
    # training-mode batch statistics over the N 1x1 activations are not modeled.
    print("KERNEL_OK")
</pallas_src>

<mosaic_0001>
module attributes {stable_mosaic.version = 11 : i64} {
  func.func @_fused_kernel(%arg0: i32, %arg1: memref<1x4x256xf32, #tpu.memory_space<vmem>>, %arg2: memref<4x1024xf32, #tpu.memory_space<vmem>>, %arg3: memref<1x1024xf32, #tpu.memory_space<vmem>>, %arg4: memref<4x1024xf32, #tpu.memory_space<vmem>>, %arg5: memref<4x1xf32, #tpu.memory_space<vmem>>, %arg6: memref<4x1xf32, #tpu.memory_space<vmem>>, %arg7: memref<4x1xf32, #tpu.memory_space<vmem>>, %arg8: memref<1x4x256xf32, #tpu.memory_space<vmem>>) attributes {dimension_semantics = [#tpu.dimension_semantics<parallel>], iteration_bounds = array<i64: 2>, scalar_prefetch = 0 : i64, scratch_operands = 0 : i64, tpu.core_type = #tpu.core_type<tc>, window_params = [{transform_indices = @transform_0, window_bounds = array<i64: 1, 4, 256>}, {pipeline_mode = #tpu.pipeline_mode<synchronous>, transform_indices = @transform_1, window_bounds = array<i64: 4, 1024>}, {pipeline_mode = #tpu.pipeline_mode<synchronous>, transform_indices = @transform_2, window_bounds = array<i64: 1, 1024>}, {pipeline_mode = #tpu.pipeline_mode<synchronous>, transform_indices = @transform_3, window_bounds = array<i64: 4, 1024>}, {pipeline_mode = #tpu.pipeline_mode<synchronous>, transform_indices = @transform_4, window_bounds = array<i64: 4, 1>}, {pipeline_mode = #tpu.pipeline_mode<synchronous>, transform_indices = @transform_5, window_bounds = array<i64: 4, 1>}, {pipeline_mode = #tpu.pipeline_mode<synchronous>, transform_indices = @transform_6, window_bounds = array<i64: 4, 1>}, {transform_indices = @transform_7, window_bounds = array<i64: 1, 4, 256>}]} {
    %c0 = arith.constant 0 : index
    %c0_0 = arith.constant 0 : index
    %c0_1 = arith.constant 0 : index
    %0 = vector.load %arg1[%c0, %c0_0, %c0_1] : memref<1x4x256xf32, #tpu.memory_space<vmem>>, vector<1x4x256xf32>
    %1 = vector.shape_cast %0 : vector<1x4x256xf32> to vector<4x256xf32>
    %cst = arith.constant dense<0.000000e+00> : vector<4xf32>
    %2 = vector.multi_reduction <add>, %1, %cst [1] : vector<4x256xf32> to vector<4xf32>
    %3 = vector.shape_cast %2 : vector<4xf32> to vector<4x1xf32>
    %cst_2 = arith.constant 3.906250e-03 : f32
    %4 = vector.broadcast %cst_2 : f32 to vector<4x1xf32>
    %5 = arith.mulf %3, %4 : vector<4x1xf32>
    %c0_3 = arith.constant 0 : index
    %c0_4 = arith.constant 0 : index
    %6 = vector.load %arg2[%c0_3, %c0_4] : memref<4x1024xf32, #tpu.memory_space<vmem>>, vector<4x1024xf32>
    %7 = vector.broadcast %5 : vector<4x1xf32> to vector<4x1024xf32>
    %8 = arith.mulf %6, %7 : vector<4x1024xf32>
    %cst_5 = arith.constant dense<0.000000e+00> : vector<1024xf32>
    %9 = vector.multi_reduction <add>, %8, %cst_5 [0] : vector<4x1024xf32> to vector<1024xf32>
    %10 = vector.shape_cast %9 : vector<1024xf32> to vector<1x1024xf32>
    %c0_6 = arith.constant 0 : index
    %c0_7 = arith.constant 0 : index
    %11 = vector.load %arg3[%c0_6, %c0_7] : memref<1x1024xf32, #tpu.memory_space<vmem>>, vector<1x1024xf32>
    %12 = arith.addf %10, %11 : vector<1x1024xf32>
    %c0_8 = arith.constant 0 : index
    %c0_9 = arith.constant 0 : index
    %13 = vector.load %arg4[%c0_8, %c0_9] : memref<4x1024xf32, #tpu.memory_space<vmem>>, vector<4x1024xf32>
    %14 = vector.broadcast %12 : vector<1x1024xf32> to vector<4x1024xf32>
    %15 = arith.mulf %13, %14 : vector<4x1024xf32>
    %cst_10 = arith.constant dense<0.000000e+00> : vector<4xf32>
    %16 = vector.multi_reduction <add>, %15, %cst_10 [1] : vector<4x1024xf32> to vector<4xf32>
    %17 = vector.shape_cast %16 : vector<4xf32> to vector<4x1xf32>
    %c0_11 = arith.constant 0 : index
    %c0_12 = arith.constant 0 : index
    %18 = vector.load %arg5[%c0_11, %c0_12] : memref<4x1xf32, #tpu.memory_space<vmem>>, vector<4x1xf32>
    %19 = arith.addf %17, %18 : vector<4x1xf32>
    %c0_13 = arith.constant 0 : index
    %c0_14 = arith.constant 0 : index
    %20 = vector.load %arg6[%c0_13, %c0_14] : memref<4x1xf32, #tpu.memory_space<vmem>>, vector<4x1xf32>
    %21 = arith.mulf %19, %20 : vector<4x1xf32>
    %c0_15 = arith.constant 0 : index
    %c0_16 = arith.constant 0 : index
    %22 = vector.load %arg7[%c0_15, %c0_16] : memref<4x1xf32, #tpu.memory_space<vmem>>, vector<4x1xf32>
    %23 = arith.addf %21, %22 : vector<4x1xf32>
    %cst_17 = arith.constant 0.000000e+00 : f32
    %24 = vector.broadcast %cst_17 : f32 to vector<4x1xf32>
    %25 = arith.maximumf %23, %24 : vector<4x1xf32>
    %c0_18 = arith.constant 0 : index
    %c0_19 = arith.constant 0 : index
    %c0_20 = arith.constant 0 : index
    %26 = vector.load %arg1[%c0_18, %c0_19, %c0_20] : memref<1x4x256xf32, #tpu.memory_space<vmem>>, vector<1x4x256xf32>
    %27 = vector.shape_cast %26 : vector<1x4x256xf32> to vector<4x256xf32>
    %28 = vector.broadcast %25 : vector<4x1xf32> to vector<4x256xf32>
    %29 = arith.mulf %27, %28 : vector<4x256xf32>
    %c0_21 = arith.constant 0 : index
    %c0_22 = arith.constant 0 : index
    %c0_23 = arith.constant 0 : index
    %30 = vector.load %arg8[%c0_21, %c0_22, %c0_23] : memref<1x4x256xf32, #tpu.memory_space<vmem>>, vector<1x4x256xf32>
    %31 = vector.shape_cast %30 : vector<1x4x256xf32> to vector<4x256xf32>
    %32 = vector.shape_cast %29 : vector<4x256xf32> to vector<1x4x256xf32>
    tpu.vector_store %arg8[%c0_21, %c0_22, %c0_23], %32 {strides = array<i32>} : memref<1x4x256xf32, #tpu.memory_space<vmem>>, vector<1x4x256xf32>,
    return
  }
  func.func @transform_0(%arg0: i32) -> (i32, i32, i32) {
    %c0_i32 = arith.constant 0 : i32
    %c0_i32_0 = arith.constant 0 : i32
    %c0_i32_1 = arith.constant 0 : i32
    return %arg0, %c0_i32, %c0_i32_0 : i32, i32, i32
  }
  func.func @transform_1(%arg0: i32) -> (i32, i32) {
    %c0_i32 = arith.constant 0 : i32
    %c0_i32_0 = arith.constant 0 : i32
    %c0_i32_1 = arith.constant 0 : i32
    return %c0_i32, %c0_i32_0 : i32, i32
  }
  func.func @transform_2(%arg0: i32) -> (i32, i32) {
    %c0_i32 = arith.constant 0 : i32
    %c0_i32_0 = arith.constant 0 : i32
    %c0_i32_1 = arith.constant 0 : i32
    return %c0_i32, %c0_i32_0 : i32, i32
  }
  func.func @transform_3(%arg0: i32) -> (i32, i32) {
    %c0_i32 = arith.constant 0 : i32
    %c0_i32_0 = arith.constant 0 : i32
    %c0_i32_1 = arith.constant 0 : i32
    return %c0_i32, %c0_i32_0 : i32, i32
  }
  func.func @transform_4(%arg0: i32) -> (i32, i32) {
    %c0_i32 = arith.constant 0 : i32
    %c0_i32_0 = arith.constant 0 : i32
    %c0_i32_1 = arith.constant 0 : i32
    return %c0_i32, %c0_i32_0 : i32, i32
  }
  func.func @transform_5(%arg0: i32) -> (i32, i32) {
    %c0_i32 = arith.constant 0 : i32
    %c0_i32_0 = arith.constant 0 : i32
    %c0_i32_1 = arith.constant 0 : i32
    return %c0_i32, %c0_i32_0 : i32, i32
  }
  func.func @transform_6(%arg0: i32) -> (i32, i32) {
    %c0_i32 = arith.constant 0 : i32
    %c0_i32_0 = arith.constant 0 : i32
    %c0_i32_1 = arith.constant 0 : i32
    return %c0_i32, %c0_i32_0 : i32, i32
  }
  func.func @transform_7(%arg0: i32) -> (i32, i32, i32) {
    %c0_i32 = arith.constant 0 : i32
    %c0_i32_0 = arith.constant 0 : i32
    %c0_i32_1 = arith.constant 0 : i32
    return %arg0, %c0_i32, %c0_i32_0 : i32, i32, i32
  }
}

</mosaic_0001>

<llo_original>
// kernel: fca_forward.1
$region0: #{fca_forward.1}
  #allocation0 [shape = 'u32[]', space=smem, size = 0x4, offset = 0x4, fixed_abs, tag = 'smem constant byte address 0x4 - core index']
  #allocation1 [shape = 'u32[144,128]{1,0:T(1,128)}', space=vmem, size = 0x12000, scoped, tag = 'internal scratch']
  %s0 = inlined_call_operand.vmem [shape: f32[2,4,256], index: 0, kind: input, shape index: {}]
  %s1 = inlined_call_operand.vmem [shape: f32[4,1024], index: 1, kind: input, shape index: {}]
  %s2 = inlined_call_operand.vmem [shape: f32[1,1024], index: 2, kind: input, shape index: {}]
  %s3 = inlined_call_operand.vmem [shape: f32[4,1024], index: 3, kind: input, shape index: {}]
  %s4 = inlined_call_operand.vmem [shape: f32[4,1], index: 4, kind: input, shape index: {}]
  %s5 = inlined_call_operand.vmem [shape: f32[4,1], index: 5, kind: input, shape index: {}]
  %s6 = inlined_call_operand.vmem [shape: f32[4,1], index: 6, kind: input, shape index: {}]
  %s7 = inlined_call_operand.vmem [shape: f32[2,4,256], index: 7, kind: output, shape index: {}]
  %s8 = sld [smem:[#allocation0]]
  $region61: #{fca_forward.1} parent=0
    _
  %s10 = ssub.s32 1, %s8
  %s11 = scalar_select 0, %s10, %s8
  loop: start=0, step=1, limit=4
  $region2: #{fca_forward.1} parent=0 // loop_pre_header
    _
  $region3: #{fca_forward.1} parent=0 // loop_header
    %s13 = sphi 0, %s17
    %p14 = scmp.ge.s32.totalorder %s13, 4
    %s23 = sphi 0, %s25
    %s26 = sphi 0, %s23
    %s27 = sphi 0, %s26
    %s43 = sphi 0, %s27
    %s47 = sphi 0, %s47
    %s49 = sphi 0, %s47
    %s50 = sphi 0, %s49
    %s64 = sphi 0, %s50
    %s68 = sphi 0, %s68
    %s70 = sphi 0, %s68
    %s71 = sphi 0, %s70
    %s85 = sphi 0, %s71
    %s89 = sphi 0, %s89
    %s91 = sphi 0, %s89
    %s92 = sphi 0, %s91
    %s106 = sphi 0, %s92
    %s110 = sphi 0, %s110
    %s112 = sphi 0, %s110
    %s113 = sphi 0, %s112
    %s127 = sphi 0, %s113
    %s131 = sphi 0, %s131
    %s133 = sphi 0, %s131
    %s134 = sphi 0, %s133
    %s148 = sphi 0, %s134
    %s152 = sphi 0, %s152
    %s154 = sphi 0, %s152
    %s155 = sphi 0, %s154
    %s169 = sphi 0, %s155
    %s175 = sphi 0, %s177
    %s178 = sphi 0, %s175
    %s179 = sphi 0, %s178
    %s195 = sphi 0, %s179
  $region4: #{fca_forward.1} parent=0 // loop_header_branch
    %16 = sbr.rel (%p14) target = $region8
  $region5: #{fca_forward.1} parent=0 // loop_body
    %s18 = ssub.s32 %s13, 1
    %s19 = ssub.s32 %s13, 2
    %s20 = sadd.s32 %s13, 1
    %s21 = ssub.s32 %s13, %s20
    %p22 = scmp.eq.s32.totalorder %s21, 0
    %s24 = sadd.s32 %s23, 1
    %s25 = scalar_select %p22, %s23, %s24
    %p28 = pneg %p22
    %p29 = scmp.eq.s32.totalorder %s13, 1
    %p30 = por %p28, %p29
    %p31 = scmp.ne.s32.totalorder %s23, %s26
    %p32 = scmp.eq.s32.totalorder %s13, 0
    %p33 = por %p31, %p32
    %p34 = scmp.ne.s32.totalorder %s23, %s26
    %p35 = scmp.eq.s32.totalorder %s18, 1
    %p36 = por %p34, %p35
    %p37 = scmp.ne.s32.totalorder %s26, %s27
    %p38 = scmp.eq.s32.totalorder %s18, 0
    %p39 = por %p37, %p38
    %p40 = scmp.ne.s32.totalorder %s26, %s27
    %p41 = scmp.eq.s32.totalorder %s19, 1
    %p42 = por %p40, %p41
    %p44 = scmp.ne.s32.totalorder %s27, %s43
    %p45 = scmp.eq.s32.totalorder %s19, 0
    %p46 = por %p44, %p45
    %s48 = sadd.s32 %s47, 1
    %p51 = scmp.eq.s32.totalorder %s13, 1
    %p52 = scmp.ne.s32.totalorder %s47, %s49
    %p53 = scmp.eq.s32.totalorder %s13, 0
    %p54 = por %p52, %p53
    %p55 = scmp.ne.s32.totalorder %s47, %s49
    %p56 = scmp.eq.s32.totalorder %s18, 1
    %p57 = por %p55, %p56
    %p58 = scmp.ne.s32.totalorder %s49, %s50
    %p59 = scmp.eq.s32.totalorder %s18, 0
    %p60 = por %p58, %p59
    %p61 = scmp.ne.s32.totalorder %s49, %s50
    %p62 = scmp.eq.s32.totalorder %s19, 1
    %p63 = por %p61, %p62
    %p65 = scmp.ne.s32.totalorder %s50, %s64
    %p66 = scmp.eq.s32.totalorder %s19, 0
    %p67 = por %p65, %p66
    %s69 = sadd.s32 %s68, 1
    %p72 = scmp.eq.s32.totalorder %s13, 1
    %p73 = scmp.ne.s32.totalorder %s68, %s70
    %p74 = scmp.eq.s32.totalorder %s13, 0
    %p75 = por %p73, %p74
    %p76 = scmp.ne.s32.totalorder %s68, %s70
    %p77 = scmp.eq.s32.totalorder %s18, 1
    %p78 = por %p76, %p77
    %p79 = scmp.ne.s32.totalorder %s70, %s71
    %p80 = scmp.eq.s32.totalorder %s18, 0
    %p81 = por %p79, %p80
    %p82 = scmp.ne.s32.totalorder %s70, %s71
    %p83 = scmp.eq.s32.totalorder %s19, 1
    %p84 = por %p82, %p83
    %p86 = scmp.ne.s32.totalorder %s71, %s85
    %p87 = scmp.eq.s32.totalorder %s19, 0
    %p88 = por %p86, %p87
    %s90 = sadd.s32 %s89, 1
    %p93 = scmp.eq.s32.totalorder %s13, 1
    %p94 = scmp.ne.s32.totalorder %s89, %s91
    %p95 = scmp.eq.s32.totalorder %s13, 0
    %p96 = por %p94, %p95
    %p97 = scmp.ne.s32.totalorder %s89, %s91
    %p98 = scmp.eq.s32.totalorder %s18, 1
    %p99 = por %p97, %p98
    %p100 = scmp.ne.s32.totalorder %s91, %s92
    %p101 = scmp.eq.s32.totalorder %s18, 0
    %p102 = por %p100, %p101
    %p103 = scmp.ne.s32.totalorder %s91, %s92
    %p104 = scmp.eq.s32.totalorder %s19, 1
    %p105 = por %p103, %p104
    %p107 = scmp.ne.s32.totalorder %s92, %s106
    %p108 = scmp.eq.s32.totalorder %s19, 0
    %p109 = por %p107, %p108
    %s111 = sadd.s32 %s110, 1
    %p114 = scmp.eq.s32.totalorder %s13, 1
    %p115 = scmp.ne.s32.totalorder %s110, %s112
    %p116 = scmp.eq.s32.totalorder %s13, 0
    %p117 = por %p115, %p116
    %p118 = scmp.ne.s32.totalorder %s110, %s112
    %p119 = scmp.eq.s32.totalorder %s18, 1
    %p120 = por %p118, %p119
    %p121 = scmp.ne.s32.totalorder %s112, %s113
    %p122 = scmp.eq.s32.totalorder %s18, 0
    %p123 = por %p121, %p122
    %p124 = scmp.ne.s32.totalorder %s112, %s113
    %p125 = scmp.eq.s32.totalorder %s19, 1
    %p126 = por %p124, %p125
    %p128 = scmp.ne.s32.totalorder %s113, %s127
    %p129 = scmp.eq.s32.totalorder %s19, 0
    %p130 = por %p128, %p129
    %s132 = sadd.s32 %s131, 1
    %p135 = scmp.eq.s32.totalorder %s13, 1
    %p136 = scmp.ne.s32.totalorder %s131, %s133
    %p137 = scmp.eq.s32.totalorder %s13, 0
    %p138 = por %p136, %p137
    %p139 = scmp.ne.s32.totalorder %s131, %s133
    %p140 = scmp.eq.s32.totalorder %s18, 1
    %p141 = por %p139, %p140
    %p142 = scmp.ne.s32.totalorder %s133, %s134
    %p143 = scmp.eq.s32.totalorder %s18, 0
    %p144 = por %p142, %p143
    %p145 = scmp.ne.s32.totalorder %s133, %s134
    %p146 = scmp.eq.s32.totalorder %s19, 1
    %p147 = por %p145, %p146
    %p149 = scmp.ne.s32.totalorder %s134, %s148
    %p150 = scmp.eq.s32.totalorder %s19, 0
    %p151 = por %p149, %p150
    %s153 = sadd.s32 %s152, 1
    %p156 = scmp.eq.s32.totalorder %s13, 1
    %p157 = scmp.ne.s32.totalorder %s152, %s154
    %p158 = scmp.eq.s32.totalorder %s13, 0
    %p159 = por %p157, %p158
    %p160 = scmp.ne.s32.totalorder %s152, %s154
    %p161 = scmp.eq.s32.totalorder %s18, 1
    %p162 = por %p160, %p161
    %p163 = scmp.ne.s32.totalorder %s154, %s155
    %p164 = scmp.eq.s32.totalorder %s18, 0
    %p165 = por %p163, %p164
    %p166 = scmp.ne.s32.totalorder %s154, %s155
    %p167 = scmp.eq.s32.totalorder %s19, 1
    %p168 = por %p166, %p167
    %p170 = scmp.ne.s32.totalorder %s155, %s169
    %p171 = scmp.eq.s32.totalorder %s19, 0
    %p172 = por %p170, %p171
    %s173 = ssub.s32 %s13, %s20
    %p174 = scmp.eq.s32.totalorder %s173, 0
    %s176 = sadd.s32 %s175, 1
    %s177 = scalar_select %p174, %s175, %s176
    %p180 = pneg %p174
    %p181 = scmp.eq.s32.totalorder %s13, 1
    %p182 = por %p180, %p181
    %p183 = scmp.ne.s32.totalorder %s175, %s178
    %p184 = scmp.eq.s32.totalorder %s13, 0
    %p185 = por %p183, %p184
    %p186 = scmp.ne.s32.totalorder %s175, %s178
    %p187 = scmp.eq.s32.totalorder %s18, 1
    %p188 = por %p186, %p187
    %p189 = scmp.ne.s32.totalorder %s178, %s179
    %p190 = scmp.eq.s32.totalorder %s18, 0
    %p191 = por %p189, %p190
    %p192 = scmp.ne.s32.totalorder %s178, %s179
    %p193 = scmp.eq.s32.totalorder %s19, 1
    %p194 = por %p192, %p193
    %p196 = scmp.ne.s32.totalorder %s179, %s195
    %p197 = scmp.eq.s32.totalorder %s19, 0
    %p198 = por %p196, %p197
    %p199 = scmp.le.s32.totalorder 1, %s13
    %p200 = scmp.lt.s32.totalorder %s13, 3
    %p201 = pnand %p199, %p200
    %p202 = pneg %p201
    // Predicated region
    $region9: #{fca_forward.1} parent=5 // pred_check
      _
    $region10: #{fca_forward.1} parent=5 // pred_check_branch
      %204 = sbr.rel (%p201) target = $region12
    $region11: #{fca_forward.1} parent=5 // pred_region
      %s205 = ssub.s32 %s13, 1
      // Predicated region
      $region13: #{fca_forward.1} parent=11 // pred_check
        %p206 = pneg %p60
      $region14: #{fca_forward.1} parent=11 // pred_check_branch
        %208 = sbr.rel (%p206) target = $region16
      $region15: #{fca_forward.1} parent=11 // pred_region
        _
      $region16: #{fca_forward.1} parent=11 // pred_fallthru
        _
      // Predicated region
      $region17: #{fca_forward.1} parent=11 // pred_check
        %p209 = pneg %p81
      $region18: #{fca_forward.1} parent=11 // pred_check_branch
        %211 = sbr.rel (%p209) target = $region20
      $region19: #{fca_forward.1} parent=11 // pred_region
        _
      $region20: #{fca_forward.1} parent=11 // pred_fallthru
        _
      // Predicated region
      $region21: #{fca_forward.1} parent=11 // pred_check
        %p212 = pneg %p102
      $region22: #{fca_forward.1} parent=11 // pred_check_branch
        %214 = sbr.rel (%p212) target = $region24
      $region23: #{fca_forward.1} parent=11 // pred_region
        _
      $region24: #{fca_forward.1} parent=11 // pred_fallthru
        _
      // Predicated region
      $region25: #{fca_forward.1} parent=11 // pred_check
        %p215 = pneg %p123
      $region26: #{fca_forward.1} parent=11 // pred_check_branch
        %217 = sbr.rel (%p215) target = $region28
      $region27: #{fca_forward.1} parent=11 // pred_region
        _
      $region28: #{fca_forward.1} parent=11 // pred_fallthru
        _
      // Predicated region
      $region29: #{fca_forward.1} parent=11 // pred_check
        %p218 = pneg %p144
      $region30: #{fca_forward.1} parent=11 // pred_check_branch
        %220 = sbr.rel (%p218) target = $region32
      $region31: #{fca_forward.1} parent=11 // pred_region
        _
      $region32: #{fca_forward.1} parent=11 // pred_fallthru
        _
      // Predicated region
      $region33: #{fca_forward.1} parent=11 // pred_check
        %p221 = pneg %p165
      $region34: #{fca_forward.1} parent=11 // pred_check_branch
        %223 = sbr.rel (%p221) target = $region36
      $region35: #{fca_forward.1} parent=11 // pred_region
        _
      $region36: #{fca_forward.1} parent=11 // pred_fallthru
        _
    $region12: #{fca_forward.1} parent=5 // pred_fallthru
      _
    %p224 = scmp.lt.s32.totalorder %s13, 2
    // Predicated region
    $region37: #{fca_forward.1} parent=5 // pred_check
      %p225 = pneg %p224
    $region38: #{fca_forward.1} parent=5 // pred_check_branch
      %227 = sbr.rel (%p225) target = $region40
    $region39: #{fca_forward.1} parent=5 // pred_region
      // Predicated region
      $region41: #{fca_forward.1} parent=39 // pred_check
        %p228 = pneg %p33
      $region42: #{fca_forward.1} parent=39 // pred_check_branch
        %230 = sbr.rel (%p228) target = $region44
      $region43: #{fca_forward.1} parent=39 // pred_region
        %p231 = scmp.lt.s32.totalorder %s13, 1
        %s232 = scalar_select %p231, %s13, 1
        %s233 = smul.addr %s232, 2
        %s234 = smul.addr %s233, 4
        %s235 = scalar_lea.vmem %s0, %s234
      $region44: #{fca_forward.1} parent=39 // pred_fallthru
        _
    $region40: #{fca_forward.1} parent=5 // pred_fallthru
      _
    %p236 = scmp.le.s32.totalorder 1, %s13
    %p237 = scmp.lt.s32.totalorder %s13, 3
    %p238 = pnand %p236, %p237
    %p239 = pneg %p238
    // Predicated region
    $region45: #{fca_forward.1} parent=5 // pred_check
      _
    $region46: #{fca_forward.1} parent=5 // pred_check_branch
      %241 = sbr.rel (%p238) target = $region48
    $region47: #{fca_forward.1} parent=5 // pred_region
      %s242 = ssub.s32 %s13, 1
      %p243 = scmp.lt.s32.totalorder %s18, 1
      %s244 = scalar_select %p243, %s18, 1
      %s245 = smul.addr %s244, 2
      %s246 = smul.addr %s245, 4
      %s247 = scalar_lea.vmem %s0, %s246
      %p248 = pneg %p39
      %p249 = pneg %p36
      %p250 = pneg %p60
      %p251 = pneg %p57
      %p252 = pneg %p81
      %p253 = pneg %p78
      %p254 = pneg %p102
      %p255 = pneg %p99
      %p256 = pneg %p123
      %p257 = pneg %p120
      %p258 = pneg %p144
      %p259 = pneg %p141
      %p260 = pneg %p165
      %p261 = pneg %p162
      %p262 = pneg %p191
      %p263 = pneg %p188
      %p264 = scmp.lt.s32.totalorder %s18, 1
      %s265 = scalar_select %p264, %s18, 1
      %s266 = smul.addr %s265, 2
      %s267 = smul.addr %s266, 4
      %s268 = scalar_lea.vmem %s7, %s267
      %p269 = scmp.lt.s32.totalorder %s18, 1
      %s270 = scalar_select %p269, %s18, 1
      %s271 = smul.addr %s270, 2
      %s272 = smul.addr %s271, 4
      %s273 = scalar_lea.vmem %s0, %s272
      %p274 = scmp.lt.s32.totalorder %s18, 1
      %s275 = scalar_select %p274, %s18, 1
      %s276 = smul.addr %s275, 2
      %s277 = smul.addr %s276, 4
      %s278 = scalar_lea.vmem %s7, %s277
      %v279 = vld [vmem:[%s273] sm:$0xff]
      %v281 = vcombine.high %v279, %v279
      %vm283 = vcmask 1043456
      %v284 = vsel %vm283, %v279, 0.0
      %v285 = vsel %vm283, %v281, 0.0
      %v286 = vadd.f32 %v284, %v285
      %287 = vadd.xlane.f32.xlu0 %v286
      %v288 = vpop.xlane.xlu0 %287
      %v289 = vmul.f32 %v288, 0.00390625
      %v290 = vld [vmem:[%s1] sm:$0xff]
      %v291 = vld [vmem:[%s1 + $0x8] sm:$0xff]
      %v292 = vld [vmem:[%s1 + $0x10] sm:$0xff]
      %v293 = vld [vmem:[%s1 + $0x18] sm:$0xff]
      %v296 = vunpack.c.l.s4 839922192
      %v297 = vunpack.c.0.s8 %v296
      %v298 = vlaneseq
      %v299 = vshrl.u32 %v298, 7
      %v300 = vsub.s32 %v297, %v299
      %v301 = vrot.slane %v289, %v300
      %v303 = vmul.f32 %v290, %v301
      %v304 = vmul.f32 %v291, %v301
      %v305 = vmul.f32 %v292, %v301
      %v306 = vmul.f32 %v293, %v301
      %v311 = vcombine.high %v303, %v303
      %v312 = vcombine.high %v304, %v304
      %v313 = vcombine.high %v305, %v305
      %v314 = vcombine.high %v306, %v306
      %v319 = vsel %vm283, %v303, 0.0
      %v320 = vrot.slane %v319, 4
      %v321 = vadd.f32 %v319, %v320
      %v322 = vrot.slane %v321, 2
      %v323 = vadd.f32 %v321, %v322
      %v324 = vrot.slane %v323, 1
      %v325 = vadd.f32 %v323, %v324
      %v326 = vsel %vm283, %v311, 0.0
      %v327 = vrot.slane %v326, 4
      %v328 = vadd.f32 %v326, %v327
      %v329 = vrot.slane %v328, 2
      %v330 = vadd.f32 %v328, %v329
      %v331 = vrot.slane %v330, 1
      %v332 = vadd.f32 %v330, %v331
      %v333 = vsel %vm283, %v304, 0.0
      %v334 = vrot.slane %v333, 4
      %v335 = vadd.f32 %v333, %v334
      %v336 = vrot.slane %v335, 2
      %v337 = vadd.f32 %v335, %v336
      %v338 = vrot.slane %v337, 1
      %v339 = vadd.f32 %v337, %v338
      %v340 = vsel %vm283, %v312, 0.0
      %v341 = vrot.slane %v340, 4
      %v342 = vadd.f32 %v340, %v341
      %v343 = vrot.slane %v342, 2
      %v344 = vadd.f32 %v342, %v343
      %v345 = vrot.slane %v344, 1
      %v346 = vadd.f32 %v344, %v345
      %v347 = vsel %vm283, %v305, 0.0
      %v348 = vrot.slane %v347, 4
      %v349 = vadd.f32 %v347, %v348
      %v350 = vrot.slane %v349, 2
      %v351 = vadd.f32 %v349, %v350
      %v352 = vrot.slane %v351, 1
      %v353 = vadd.f32 %v351, %v352
      %v354 = vsel %vm283, %v313, 0.0
      %v355 = vrot.slane %v354, 4
      %v356 = vadd.f32 %v354, %v355
      %v357 = vrot.slane %v356, 2
      %v358 = vadd.f32 %v356, %v357
      %v359 = vrot.slane %v358, 1
      %v360 = vadd.f32 %v358, %v359
      %v361 = vsel %vm283, %v306, 0.0
      %v362 = vrot.slane %v361, 4
      %v363 = vadd.f32 %v361, %v362
      %v364 = vrot.slane %v363, 2
      %v365 = vadd.f32 %v363, %v364
      %v366 = vrot.slane %v365, 1
      %v367 = vadd.f32 %v365, %v366
      %v368 = vsel %vm283, %v314, 0.0
      %v369 = vrot.slane %v368, 4
      %v370 = vadd.f32 %v368, %v369
      %v371 = vrot.slane %v370, 2
      %v372 = vadd.f32 %v370, %v371
      %v373 = vrot.slane %v372, 1
      %v374 = vadd.f32 %v372, %v373
      %v375 = vld [vmem:[%s2] sm:$0xff]
      %v377 = vlaneseq
      %v378 = vshrl.u32 %v377, 7
      %v379 = vsub.s32 0, %v378
      %v380 = vrot.slane %v375, %v379
      %v381 = vlaneseq
      %v382 = vshrl.u32 %v381, 7
      %v383 = vsub.s32 1, %v382
      %v384 = vrot.slane %v375, %v383
      %v385 = vlaneseq
      %v386 = vshrl.u32 %v385, 7
      %v387 = vsub.s32 2, %v386
      %v388 = vrot.slane %v375, %v387
      %v389 = vlaneseq
      %v390 = vshrl.u32 %v389, 7
      %v391 = vsub.s32 3, %v390
      %v392 = vrot.slane %v375, %v391
      %v393 = vlaneseq
      %v394 = vshrl.u32 %v393, 7
      %v395 = vsub.s32 4, %v394
      %v396 = vrot.slane %v375, %v395
      %v397 = vlaneseq
      %v398 = vshrl.u32 %v397, 7
      %v399 = vsub.s32 5, %v398
      %v400 = vrot.slane %v375, %v399
      %v401 = vlaneseq
      %v402 = vshrl.u32 %v401, 7
      %v403 = vsub.s32 6, %v402
      %v404 = vrot.slane %v375, %v403
      %v405 = vlaneseq
      %v406 = vshrl.u32 %v405, 7
      %v407 = vsub.s32 7, %v406
      %v408 = vrot.slane %v375, %v407
      %v417 = vadd.f32 %v325, %v380
      %v418 = vadd.f32 %v332, %v384
      %v419 = vadd.f32 %v339, %v388
      %v420 = vadd.f32 %v346, %v392
      %v421 = vadd.f32 %v353, %v396
      %v422 = vadd.f32 %v360, %v400
      %v423 = vadd.f32 %v367, %v404
      %v424 = vadd.f32 %v374, %v408
      %v425 = vld [vmem:[%s3] sm:$0xff]
      %v426 = vld [vmem:[%s3 + $0x8] sm:$0xff]
      %v427 = vld [vmem:[%s3 + $0x10] sm:$0xff]
      %v428 = vld [vmem:[%s3 + $0x18] sm:$0xff]
      %v429 = vlaneseq
      %v430 = vshrl.u32 %v429, 7
      %v431 = vsub.s32 0, %v430
      %v432 = vrot.slane %v417, %v431
      %v433 = vlaneseq
      %v434 = vshrl.u32 %v433, 7
      %v435 = vsub.s32 0, %v434
      %v436 = vrot.slane %v418, %v435
      %v437 = vlaneseq
      %v438 = vshrl.u32 %v437, 7
      %v439 = vsub.s32 0, %v438
      %v440 = vrot.slane %v419, %v439
      %v441 = vlaneseq
      %v442 = vshrl.u32 %v441, 7
      %v443 = vsub.s32 0, %v442
      %v444 = vrot.slane %v420, %v443
      %v445 = vlaneseq
      %v446 = vshrl.u32 %v445, 7
      %v447 = vsub.s32 0, %v446
      %v448 = vrot.slane %v421, %v447
      %v449 = vlaneseq
      %v450 = vshrl.u32 %v449, 7
      %v451 = vsub.s32 0, %v450
      %v452 = vrot.slane %v422, %v451
      %v453 = vlaneseq
      %v454 = vshrl.u32 %v453, 7
      %v455 = vsub.s32 0, %v454
      %v456 = vrot.slane %v423, %v455
      %v457 = vlaneseq
      %v458 = vshrl.u32 %v457, 7
      %v459 = vsub.s32 0, %v458
      %v460 = vrot.slane %v424, %v459
      %v469 = vcombine.low %v432, %v436
      %v470 = vcombine.low %v440, %v444
      %v471 = vcombine.low %v448, %v452
      %v472 = vcombine.low %v456, %v460
      %v477 = vmul.f32 %v425, %v469
      %v478 = vmul.f32 %v426, %v470
      %v479 = vmul.f32 %v427, %v471
      %v480 = vmul.f32 %v428, %v472
      %v485 = vcombine.high %v477, %v477
      %v486 = vcombine.high %v478, %v478
      %v487 = vcombine.high %v479, %v479
      %v488 = vcombine.high %v480, %v480
      %v493 = vsel %vm283, %v477, 0.0
      %v494 = vsel %vm283, %v485, 0.0
      %v495 = vadd.f32 %v493, %v494
      %v496 = vsel %vm283, %v478, 0.0
      %v497 = vadd.f32 %v495, %v496
      %v498 = vsel %vm283, %v486, 0.0
      %v499 = vadd.f32 %v497, %v498
      %v500 = vsel %vm283, %v479, 0.0
      %v501 = vadd.f32 %v499, %v500
      %v502 = vsel %vm283, %v487, 0.0
      %v503 = vadd.f32 %v501, %v502
      %v504 = vsel %vm283, %v480, 0.0
      %v505 = vadd.f32 %v503, %v504
      %v506 = vsel %vm283, %v488, 0.0
      %v507 = vadd.f32 %v505, %v506
      %508 = vadd.xlane.f32.xlu0 %v507
      %v509 = vpop.xlane.xlu0 %508
      %v510 = vld [vmem:[%s4] sm:$0xf]
      %v511 = vadd.f32 %v509, %v510
      %v512 = vld [vmem:[%s5] sm:$0xf]
      %v513 = vmul.f32 %v511, %v512
      %v514 = vld [vmem:[%s6] sm:$0xf]
      %v515 = vadd.f32 %v513, %v514
      %v516 = vmax.f32 %v515, 0.0
      %518 = vset.pattern.permute.xlu0 0
      %519 = vperm.xlu0 %518, %v516
      %v520 = vpop.permute.xlu0 %519
      %v522 = vunpack.c.l.s4 839922192
      %v523 = vunpack.c.0.s8 %v522
      %v524 = vlaneseq
      %v525 = vshrl.u32 %v524, 7
      %v526 = vsub.s32 %v523, %v525
      %v527 = vrot.slane %v520, %v526
      %v529 = vmul.f32 %v279, %v527
      %530 = vst [vmem:[%s278] sm:$0xff] %v529
      %p531 = scmp.lt.s32.totalorder %s18, 1
      %s532 = scalar_select %p531, %s18, 1
      %s533 = smul.addr %s532, 2
      %s534 = smul.addr %s533, 4
      %s535 = scalar_lea.vmem %s7, %s534
      // Predicated region
      $region49: #{fca_forward.1} parent=47 // pred_check
        %p536 = pneg %p188
      $region50: #{fca_forward.1} parent=47 // pred_check_branch
        %538 = sbr.rel (%p536) target = $region52
      $region51: #{fca_forward.1} parent=47 // pred_region
        _
      $region52: #{fca_forward.1} parent=47 // pred_fallthru
        _
    $region48: #{fca_forward.1} parent=5 // pred_fallthru
      _
    %p539 = scmp.le.s32.totalorder 2, %s13
    // Predicated region
    $region53: #{fca_forward.1} parent=5 // pred_check
      %p540 = pneg %p539
    $region54: #{fca_forward.1} parent=5 // pred_check_branch
      %542 = sbr.rel (%p540) target = $region56
    $region55: #{fca_forward.1} parent=5 // pred_region
      %s543 = ssub.s32 %s13, 2
      // Predicated region
      $region57: #{fca_forward.1} parent=55 // pred_check
        %p544 = pneg %p194
      $region58: #{fca_forward.1} parent=55 // pred_check_branch
        %546 = sbr.rel (%p544) target = $region60
      $region59: #{fca_forward.1} parent=55 // pred_region
        %p547 = scmp.lt.s32.totalorder %s19, 1
        %s548 = scalar_select %p547, %s19, 1
        %s549 = smul.addr %s548, 2
        %s550 = smul.addr %s549, 4
        %s551 = scalar_lea.vmem %s7, %s550
      $region60: #{fca_forward.1} parent=55 // pred_fallthru
        _
    $region56: #{fca_forward.1} parent=5 // pred_fallthru
      _
  $region6: #{fca_forward.1} parent=0 // loop_footer
    %s17 = sadd.s32 1, %s13
  $region7: #{fca_forward.1} parent=0 // loop_footer_branch
    %12 = sbr.rel target = $region3
  $region8: #{fca_forward.1} parent=0 // loop_exit
    _

</llo_original>
